<compile_context>
chip_gen: v7x
topology: tpu7x:2x2x1
jax: 0.10.0
libtpu: 0.0.40
codegen_flags: <defaults>
</compile_context>

<pallas_src>
import functools

import jax
import jax.numpy as jnp
from jax.experimental import pallas as pl
from jax.experimental.pallas import tpu as pltpu


def _round_up(x, m):
    return ((x + m - 1) // m) * m


def _ffn_kernel(x_ref, w13t_ref, w2t_ref, o_ref, *, th):
    """SwiGLU FFN tile: o(+)= ( silu(x @ w1_k) * (x @ w3_k) ) @ w2_k.

    Grid: (token-tile i [parallel], hidden-tile k [arbitrary / reduction]).
      x_ref:    (tm, dim)    f32  — same tile across all k (re-fetch skipped)
      w13t_ref: (dim, 2*th)  bf16 — [w1^T slice | w3^T slice] for hidden tile k
      w2t_ref:  (th, dim)    bf16 — w2^T slice for hidden tile k
      o_ref:    (tm, dim)    f32  — resident across k (block index constant)
    """
    k = pl.program_id(1)

    x = x_ref[...].astype(w13t_ref.dtype)  # per-tile cast, no wrapper HBM pass
    h13 = jnp.dot(x, w13t_ref[...], preferred_element_type=jnp.float32)  # (tm, 2*th)
    h1 = h13[:, :th]
    h3 = h13[:, th:]
    # SiLU gate in f32; exp and (approx) reciprocal both run on the EUP slot.
    gate = h1 * pl.reciprocal(1.0 + jnp.exp(-h1), approx=True)
    h = (gate * h3).astype(w2t_ref.dtype)
    partial = jnp.dot(h, w2t_ref[...], preferred_element_type=jnp.float32)

    @pl.when(k == 0)
    def _():
        o_ref[...] = partial            # first partial product: plain store

    @pl.when(k > 0)
    def _():
        o_ref[...] += partial           # accumulate in place (f32 output tile)


def prepare_ffn_weights(w1, w2, w3, *, th=None,
                        resident_budget_bytes=12 * 1024 * 1024,
                        dtype=jnp.bfloat16):
    """One-time weight prep — call OUTSIDE the per-token forward.

    Inputs use the PyTorch nn.Linear layout: w1, w3: (hidden, dim); w2: (dim, hidden).
    Returns (w13t, w2t, th):
      w13t: (dim, n_k*2*th) bf16, hidden tile k stored as [w1^T slice | w3^T slice]
      w2t:  (h_pad, dim)    bf16
    Hidden is zero-padded to a lane-dense multiple of 128 / th (exact: the padded
    columns give silu(0)*0 = 0 and the padded w2 rows are zero).
    """
    hidden, dim = w1.shape
    h_pad = _round_up(hidden, 128)
    if th is None:
        # Weights resident (single reduction step) if they comfortably fit VMEM,
        # otherwise stream 512-wide hidden slices.
        th = h_pad if 3 * dim * h_pad * 2 <= resident_budget_bytes else 512
    th = min(th, h_pad)
    assert th % 128 == 0
    h_pad = _round_up(h_pad, th)
    pad = h_pad - hidden

    w1t = jnp.pad(w1, ((0, pad), (0, 0))).T.astype(dtype)   # (dim, h_pad)
    w3t = jnp.pad(w3, ((0, pad), (0, 0))).T.astype(dtype)   # (dim, h_pad)
    w2t = jnp.pad(w2, ((0, 0), (0, pad))).T.astype(dtype)   # (h_pad, dim)

    n_k = h_pad // th
    # Interleave per hidden tile so a (dim, 2*th) block at index k is
    # [w1^T[:, k*th:(k+1)*th] | w3^T[:, k*th:(k+1)*th]].
    w13t = jnp.concatenate(
        [w1t.reshape(dim, n_k, th), w3t.reshape(dim, n_k, th)], axis=2
    ).reshape(dim, n_k * 2 * th)
    return w13t, w2t, th


def _vmem_budget_bytes():
    # Generation-aware cap: ~75% of physical per-core VMEM (≈96 MiB on v5e/v6e,
    # ≈48 MiB on v7x); conservative fallback if the query is unavailable.
    try:
        cap = int(pltpu.get_tpu_info().vmem_capacity_bytes)
        return max(32 * 1024 * 1024, int(cap * 0.75))
    except Exception:
        return 48 * 1024 * 1024


def feed_forward(x, w13t, w2t, th, *, tm=512):
    """x: (..., dim).  w13t / w2t / th come from prepare_ffn_weights."""
    orig_shape = x.shape
    dim = orig_shape[-1]
    M = 1
    for s in orig_shape[:-1]:
        M *= s
    x2d = x.reshape(M, dim).astype(jnp.float32)

    n_k = w13t.shape[1] // (2 * th)
    vmem_budget = _vmem_budget_bytes()

    # Token tile: as large as allowed (weight-streaming roofline), clamped to the
    # problem size and kept a multiple of 16 (bf16 sublane packing).
    tm = min(tm, _round_up(M, 16))
    tm = max(16, (tm // 16) * 16)

    def step_bytes(tm_):
        x_b = tm_ * dim * 4 * 2            # f32 input tile, double buffered
        w13_b = dim * 2 * th * 2 * 2       # bf16 fused [w1|w3] tile
        w2_b = th * dim * 2 * 2            # bf16 w2 tile
        o_b = tm_ * dim * 4 * 2            # f32 output tile
        return x_b + w13_b + w2_b + o_b

    while tm > 16 and step_bytes(tm) > int(vmem_budget * 0.8):
        tm = max(16, (tm // 2 // 16) * 16)

    m_pad = _round_up(M, tm)
    if m_pad != M:
        x2d = jnp.pad(x2d, ((0, m_pad - M), (0, 0)))

    grid = (m_pad // tm, n_k)

    out2d = pl.pallas_call(
        functools.partial(_ffn_kernel, th=th),
        out_shape=jax.ShapeDtypeStruct((m_pad, dim), jnp.float32),
        grid_spec=pltpu.PrefetchScalarGridSpec(
            num_scalar_prefetch=0,
            grid=grid,
            in_specs=[
                pl.BlockSpec((tm, dim), lambda i, k: (i, 0)),       # x tile (f32)
                pl.BlockSpec((dim, 2 * th), lambda i, k: (0, k)),   # [w1|w3]^T slice
                pl.BlockSpec((th, dim), lambda i, k: (k, 0)),       # w2^T slice
            ],
            out_specs=pl.BlockSpec((tm, dim), lambda i, k: (i, 0)),
        ),
        compiler_params=pltpu.CompilerParams(
            dimension_semantics=("parallel", "arbitrary"),
            vmem_limit_bytes=vmem_budget,
        ),
    )(x2d, w13t, w2t)

    out2d = out2d[:M]
    if x.dtype != jnp.float32:
        out2d = out2d.astype(x.dtype)
    return out2d.reshape(orig_shape)


def reference(x, w1, w2, w3):
    # Pure-JAX f32 reference matching the PyTorch module semantics.
    h1 = x @ w1.T
    h3 = x @ w3.T
    h = (h1 * jax.nn.sigmoid(h1)) * h3
    return h @ w2.T


if __name__ == "__main__":
    # Module hyperparameters (same arithmetic as FeedForward.__init__)
    dim = 128
    hidden_dim_arg = 256
    multiple_of = 32
    hidden = int(2 * hidden_dim_arg / 3)
    hidden = multiple_of * ((hidden + multiple_of - 1) // multiple_of)  # -> 192

    B, S = 2, 8

    key = jax.random.PRNGKey(0)
    kx, k1, k2, k3 = jax.random.split(key, 4)
    x = jax.random.normal(kx, (B, S, dim), dtype=jnp.float32)
    # PyTorch Linear weight layout: (out_features, in_features)
    w1 = jax.random.normal(k1, (hidden, dim), dtype=jnp.float32) * 0.02
    w2 = jax.random.normal(k2, (dim, hidden), dtype=jnp.float32) * 0.02
    w3 = jax.random.normal(k3, (hidden, dim), dtype=jnp.float32) * 0.02

    # One-time weight prep (fused/interleaved w1|w3, hidden-padded, bf16), then forward.
    w13t, w2t, th = prepare_ffn_weights(w1, w2, w3)
    out = feed_forward(x, w13t, w2t, th)
    out = jax.block_until_ready(out)

    ref = reference(x, w1, w2, w3)
    assert out.shape == (B, S, dim)
    # bf16 matmul operands with f32 accumulation -> ~1% relative error budget.
    assert jnp.allclose(out, ref, atol=2e-2, rtol=2e-2), (
        float(jnp.max(jnp.abs(out - ref))))

    print("KERNEL_OK")
</pallas_src>

<mosaic_0001>
module attributes {stable_mosaic.version = 11 : i64} {
  func.func @_ffn_kernel(%arg0: i32, %arg1: i32, %arg2: memref<16x128xf32, #tpu.memory_space<vmem>>, %arg3: memref<128x512xbf16, #tpu.memory_space<vmem>>, %arg4: memref<256x128xbf16, #tpu.memory_space<vmem>>, %arg5: memref<16x128xf32, #tpu.memory_space<vmem>>) attributes {dimension_semantics = [#tpu.dimension_semantics<parallel>, #tpu.dimension_semantics<arbitrary>], iteration_bounds = array<i64: 1, 1>, scalar_prefetch = 0 : i64, scratch_operands = 0 : i64, tpu.core_type = #tpu.core_type<tc>, window_params = [{transform_indices = @transform_0, window_bounds = array<i64: 16, 128>}, {transform_indices = @transform_1, window_bounds = array<i64: 128, 512>}, {transform_indices = @transform_2, window_bounds = array<i64: 256, 128>}, {transform_indices = @transform_3, window_bounds = array<i64: 16, 128>}]} {
    %c0 = arith.constant 0 : index
    %c0_0 = arith.constant 0 : index
    %0 = vector.load %arg2[%c0, %c0_0] : memref<16x128xf32, #tpu.memory_space<vmem>>, vector<16x128xf32>
    %1 = arith.truncf %0 : vector<16x128xf32> to vector<16x128xbf16>
    %c0_1 = arith.constant 0 : index
    %c0_2 = arith.constant 0 : index
    %2 = vector.load %arg3[%c0_1, %c0_2] : memref<128x512xbf16, #tpu.memory_space<vmem>>, vector<128x512xbf16>
    %cst = arith.constant dense<0.000000e+00> : vector<16x512xf32>
    %3 = tpu.matmul %1, %2, %cst {dimension_numbers = #tpu.dot_dimension_numbers<[1], [0], [0], [1], [0, 0, 1, 1], [], []>} : vector<16x128xbf16>, vector<128x512xbf16>, vector<16x512xf32> -> vector<16x512xf32>
    %4 = vector.extract_strided_slice %3 {offsets = [0, 0], sizes = [16, 256], strides = [1, 1]} : vector<16x512xf32> to vector<16x256xf32>
    %5 = vector.extract_strided_slice %3 {offsets = [0, 256], sizes = [16, 256], strides = [1, 1]} : vector<16x512xf32> to vector<16x256xf32>
    %cst_3 = arith.constant 0.000000e+00 : f32
    %6 = vector.broadcast %cst_3 : f32 to vector<16x256xf32>
    %7 = arith.subf %6, %4 : vector<16x256xf32>
    %8 = math.exp %7 : vector<16x256xf32>
    %cst_4 = arith.constant 1.000000e+00 : f32
    %9 = vector.broadcast %cst_4 : f32 to vector<16x256xf32>
    %10 = arith.addf %9, %8 : vector<16x256xf32>
    %11 = tpu.reciprocal %10 {approx = true} : vector<16x256xf32> -> vector<16x256xf32>
    %12 = arith.mulf %4, %11 : vector<16x256xf32>
    %13 = arith.mulf %12, %5 : vector<16x256xf32>
    %14 = arith.truncf %13 : vector<16x256xf32> to vector<16x256xbf16>
    %c0_5 = arith.constant 0 : index
    %c0_6 = arith.constant 0 : index
    %15 = vector.load %arg4[%c0_5, %c0_6] : memref<256x128xbf16, #tpu.memory_space<vmem>>, vector<256x128xbf16>
    %cst_7 = arith.constant dense<0.000000e+00> : vector<16x128xf32>
    %16 = tpu.matmul %14, %15, %cst_7 {dimension_numbers = #tpu.dot_dimension_numbers<[1], [0], [0], [1], [0, 0, 1, 1], [], []>} : vector<16x256xbf16>, vector<256x128xbf16>, vector<16x128xf32> -> vector<16x128xf32>
    %c0_i32 = arith.constant 0 : i32
    %17 = arith.cmpi eq, %arg1, %c0_i32 : i32
    %18 = arith.extui %17 : i1 to i32
    %c0_i32_8 = arith.constant 0 : i32
    %19 = arith.cmpi ne, %18, %c0_i32_8 : i32
    scf.if %19 {
      %c0_11 = arith.constant 0 : index
      %c0_12 = arith.constant 0 : index
      %23 = vector.load %arg5[%c0_11, %c0_12] : memref<16x128xf32, #tpu.memory_space<vmem>>, vector<16x128xf32>
      tpu.vector_store %arg5[%c0_11, %c0_12], %16 {strides = array<i32>} : memref<16x128xf32, #tpu.memory_space<vmem>>, vector<16x128xf32>,
    } else {
    }
    %c0_i32_9 = arith.constant 0 : i32
    %20 = arith.cmpi sgt, %arg1, %c0_i32_9 : i32
    %21 = arith.extui %20 : i1 to i32
    %c0_i32_10 = arith.constant 0 : i32
    %22 = arith.cmpi ne, %21, %c0_i32_10 : i32
    scf.if %22 {
      %c0_11 = arith.constant 0 : index
      %c0_12 = arith.constant 0 : index
      %23 = vector.load %arg5[%c0_11, %c0_12] : memref<16x128xf32, #tpu.memory_space<vmem>>, vector<16x128xf32>
      %24 = arith.addf %23, %16 : vector<16x128xf32>
      %c0_13 = arith.constant 0 : index
      %c0_14 = arith.constant 0 : index
      %25 = vector.load %arg5[%c0_13, %c0_14] : memref<16x128xf32, #tpu.memory_space<vmem>>, vector<16x128xf32>
      tpu.vector_store %arg5[%c0_13, %c0_14], %24 {strides = array<i32>} : memref<16x128xf32, #tpu.memory_space<vmem>>, vector<16x128xf32>,
    } else {
    }
    return
  }
  func.func @transform_0(%arg0: i32, %arg1: i32) -> (i32, i32) {
    %c0_i32 = arith.constant 0 : i32
    %c0_i32_0 = arith.constant 0 : i32
    return %arg0, %c0_i32 : i32, i32
  }
  func.func @transform_1(%arg0: i32, %arg1: i32) -> (i32, i32) {
    %c0_i32 = arith.constant 0 : i32
    %c0_i32_0 = arith.constant 0 : i32
    return %c0_i32, %arg1 : i32, i32
  }
  func.func @transform_2(%arg0: i32, %arg1: i32) -> (i32, i32) {
    %c0_i32 = arith.constant 0 : i32
    %c0_i32_0 = arith.constant 0 : i32
    return %arg1, %c0_i32 : i32, i32
  }
  func.func @transform_3(%arg0: i32, %arg1: i32) -> (i32, i32) {
    %c0_i32 = arith.constant 0 : i32
    %c0_i32_0 = arith.constant 0 : i32
    return %arg0, %c0_i32 : i32, i32
  }
}

</mosaic_0001>

<llo_original>
// kernel: tpu_custom_call.1
$region0: #{tpu_custom_call.1}
  #allocation0 [shape = 'u32[]', space=smem, size = 0x4, offset = 0x4, fixed_abs, tag = 'smem constant byte address 0x4 - core index']
  #allocation1 [shape = 'u32[144,128]{1,0:T(1,128)}', space=vmem, size = 0x12000, scoped, tag = 'internal scratch']
  %s0 = inlined_call_operand.hbm [shape: f32[16,128], index: 0, kind: input, shape index: {}]
  %s1 = inlined_call_operand.hbm [shape: bf16[128,512], index: 1, kind: input, shape index: {}]
  %s2 = inlined_call_operand.hbm [shape: bf16[256,128], index: 2, kind: input, shape index: {}]
  %s3 = inlined_call_operand.hbm [shape: f32[16,128], index: 3, kind: output, shape index: {}]
  %s4 = sld [smem:[#allocation0]]
  $region42: #{tpu_custom_call.1} parent=0
    _
  %s6 = ssub.s32 1, %s4
  %s7 = scalar_select 0, %s6, %s4
  $region1: #{tpu_custom_call.1} parent=0
    #allocation2 [shape = 'u8[8192]{0}', space=vmem, size = 0x2000, scoped, tag = 'input window, operand 0, single buffered']
    #allocation3 [shape = 's32[1]{0}', space=sflag, size = 0x4, scoped, tag = 'scoped memory for tpu_custom_call.1']
    #allocation4 [shape = 's32[1]{0}', space=sflag, size = 0x4, scoped, tag = 'scoped memory for tpu_custom_call.1']
    #allocation5 [shape = 'u8[131072]{0}', space=vmem, size = 0x20000, scoped, tag = 'input window, operand 1, single buffered']
    #allocation6 [shape = 's32[1]{0}', space=sflag, size = 0x4, scoped, tag = 'scoped memory for tpu_custom_call.1']
    #allocation7 [shape = 'u8[65536]{0}', space=vmem, size = 0x10000, scoped, tag = 'input window, operand 2, single buffered']
    #allocation8 [shape = 'u8[8192]{0}', space=vmem, size = 0x2000, scoped, tag = 'output window, operand 0, single buffered']
    %8 = vsyncpa [#allocation3], 0
    %9 = vsyncpa [#allocation6], 0
    %10 = vsyncpa [#allocation4], 0
    // Predicated region
    $region2: #{tpu_custom_call.1} parent=1 // pred_check
      _
    $region3: #{tpu_custom_call.1} parent=1 // pred_check_branch
      %12 = sbr.rel (0) target = $region5
    $region4: #{tpu_custom_call.1} parent=1 // pred_region
      %s14 = ssub.s32 256, 256
      %15 = vsyncadd [#allocation3], %s14
      %s16 = sshll.u32 [#allocation2], 4
      %s17 = int_to_ptr.vmem [resolvable:$true] %s16
      %22 = dma.hbm_to_vmem [thread:$0]  %s0, 256, %s17, [#allocation3], 128, 128, 8
    $region5: #{tpu_custom_call.1} parent=1 // pred_fallthru
      _
    // Predicated region
    $region6: #{tpu_custom_call.1} parent=1 // pred_check
      _
    $region7: #{tpu_custom_call.1} parent=1 // pred_check_branch
      %24 = sbr.rel (0) target = $region9
    $region8: #{tpu_custom_call.1} parent=1 // pred_region
      %s26 = ssub.s32 4096, 4096
      %27 = vsyncadd [#allocation6], %s26
      %s28 = sshll.u32 [#allocation5], 4
      %s29 = int_to_ptr.vmem [resolvable:$true] %s28
      %34 = dma.hbm_to_vmem [thread:$0]  %s1, 4096, %s29, [#allocation6], 256, 256, 16
    $region9: #{tpu_custom_call.1} parent=1 // pred_fallthru
      _
    // Predicated region
    $region10: #{tpu_custom_call.1} parent=1 // pred_check
      _
    $region11: #{tpu_custom_call.1} parent=1 // pred_check_branch
      %36 = sbr.rel (0) target = $region13
    $region12: #{tpu_custom_call.1} parent=1 // pred_region
      %s38 = ssub.s32 2048, 2048
      %39 = vsyncadd [#allocation6], %s38
      %s40 = sshll.u32 [#allocation7], 4
      %s41 = int_to_ptr.vmem [resolvable:$true] %s40
      %46 = dma.hbm_to_vmem [thread:$0]  %s2, 2048, %s41, [#allocation6], 64, 64, 4
    $region13: #{tpu_custom_call.1} parent=1 // pred_fallthru
      _
    // Predicated region
    $region14: #{tpu_custom_call.1} parent=1 // pred_check
      _
    $region15: #{tpu_custom_call.1} parent=1 // pred_check_branch
      %48 = sbr.rel (0) target = $region17
    $region16: #{tpu_custom_call.1} parent=1 // pred_region
      %49 = dma.done [#allocation3], 256
    $region17: #{tpu_custom_call.1} parent=1 // pred_fallthru
      _
    // Predicated region
    $region18: #{tpu_custom_call.1} parent=1 // pred_check
      _
    $region19: #{tpu_custom_call.1} parent=1 // pred_check_branch
      %51 = sbr.rel (0) target = $region21
    $region20: #{tpu_custom_call.1} parent=1 // pred_region
      %52 = dma.done [#allocation6], 4096
    $region21: #{tpu_custom_call.1} parent=1 // pred_fallthru
      _
    // Predicated region
    $region22: #{tpu_custom_call.1} parent=1 // pred_check
      _
    $region23: #{tpu_custom_call.1} parent=1 // pred_check_branch
      %54 = sbr.rel (0) target = $region25
    $region24: #{tpu_custom_call.1} parent=1 // pred_region
      %55 = dma.done [#allocation6], 2048
    $region25: #{tpu_custom_call.1} parent=1 // pred_fallthru
      _
    %v57 = vld [vmem:[#allocation2] sm:$0xff]
    %v58 = vld [vmem:[#allocation2 + $0x8] sm:$0xff]
    %v59 = vpack.c.bf16 %v58, %v57
    %v60 = vld [vmem:[#allocation5] sm:$0xff]
    %v61 = vld [vmem:[#allocation5 + $0x8] sm:$0xff]
    %v62 = vld [vmem:[#allocation5 + $0x10] sm:$0xff]
    %v63 = vld [vmem:[#allocation5 + $0x18] sm:$0xff]
    %v64 = vld [vmem:[#allocation5 + $0x20] sm:$0xff]
    %v65 = vld [vmem:[#allocation5 + $0x28] sm:$0xff]
    %v66 = vld [vmem:[#allocation5 + $0x30] sm:$0xff]
    %v67 = vld [vmem:[#allocation5 + $0x38] sm:$0xff]
    %v68 = vld [vmem:[#allocation5 + $0x40] sm:$0xff]
    %v69 = vld [vmem:[#allocation5 + $0x48] sm:$0xff]
    %v70 = vld [vmem:[#allocation5 + $0x50] sm:$0xff]
    %v71 = vld [vmem:[#allocation5 + $0x58] sm:$0xff]
    %v72 = vld [vmem:[#allocation5 + $0x60] sm:$0xff]
    %v73 = vld [vmem:[#allocation5 + $0x68] sm:$0xff]
    %v74 = vld [vmem:[#allocation5 + $0x70] sm:$0xff]
    %v75 = vld [vmem:[#allocation5 + $0x78] sm:$0xff]
    %v76 = vld [vmem:[#allocation5 + $0x80] sm:$0xff]
    %v77 = vld [vmem:[#allocation5 + $0x88] sm:$0xff]
    %v78 = vld [vmem:[#allocation5 + $0x90] sm:$0xff]
    %v79 = vld [vmem:[#allocation5 + $0x98] sm:$0xff]
    %v80 = vld [vmem:[#allocation5 + $0xa0] sm:$0xff]
    %v81 = vld [vmem:[#allocation5 + $0xa8] sm:$0xff]
    %v82 = vld [vmem:[#allocation5 + $0xb0] sm:$0xff]
    %v83 = vld [vmem:[#allocation5 + $0xb8] sm:$0xff]
    %v84 = vld [vmem:[#allocation5 + $0xc0] sm:$0xff]
    %v85 = vld [vmem:[#allocation5 + $0xc8] sm:$0xff]
    %v86 = vld [vmem:[#allocation5 + $0xd0] sm:$0xff]
    %v87 = vld [vmem:[#allocation5 + $0xd8] sm:$0xff]
    %v88 = vld [vmem:[#allocation5 + $0xe0] sm:$0xff]
    %v89 = vld [vmem:[#allocation5 + $0xe8] sm:$0xff]
    %v90 = vld [vmem:[#allocation5 + $0xf0] sm:$0xff]
    %v91 = vld [vmem:[#allocation5 + $0xf8] sm:$0xff]
    %v124 = vunpack.c.l.b16 %v60
    %v125 = vunpack.c.h.b16 %v60
    %v126 = vunpack.c.l.b16 %v61
    %v127 = vunpack.c.h.b16 %v61
    %v128 = vunpack.c.l.b16 %v62
    %v129 = vunpack.c.h.b16 %v62
    %v130 = vunpack.c.l.b16 %v63
    %v131 = vunpack.c.h.b16 %v63
    %v132 = vunpack.c.l.b16 %v64
    %v133 = vunpack.c.h.b16 %v64
    %v134 = vunpack.c.l.b16 %v65
    %v135 = vunpack.c.h.b16 %v65
    %v136 = vunpack.c.l.b16 %v66
    %v137 = vunpack.c.h.b16 %v66
    %v138 = vunpack.c.l.b16 %v67
    %v139 = vunpack.c.h.b16 %v67
    %v140 = vunpack.c.l.b16 %v68
    %v141 = vunpack.c.h.b16 %v68
    %v142 = vunpack.c.l.b16 %v69
    %v143 = vunpack.c.h.b16 %v69
    %v144 = vunpack.c.l.b16 %v70
    %v145 = vunpack.c.h.b16 %v70
    %v146 = vunpack.c.l.b16 %v71
    %v147 = vunpack.c.h.b16 %v71
    %v148 = vunpack.c.l.b16 %v72
    %v149 = vunpack.c.h.b16 %v72
    %v150 = vunpack.c.l.b16 %v73
    %v151 = vunpack.c.h.b16 %v73
    %v152 = vunpack.c.l.b16 %v74
    %v153 = vunpack.c.h.b16 %v74
    %v154 = vunpack.c.l.b16 %v75
    %v155 = vunpack.c.h.b16 %v75
    %v156 = vunpack.c.l.b16 %v76
    %v157 = vunpack.c.h.b16 %v76
    %v158 = vunpack.c.l.b16 %v77
    %v159 = vunpack.c.h.b16 %v77
    %v160 = vunpack.c.l.b16 %v78
    %v161 = vunpack.c.h.b16 %v78
    %v162 = vunpack.c.l.b16 %v79
    %v163 = vunpack.c.h.b16 %v79
    %v164 = vunpack.c.l.b16 %v80
    %v165 = vunpack.c.h.b16 %v80
    %v166 = vunpack.c.l.b16 %v81
    %v167 = vunpack.c.h.b16 %v81
    %v168 = vunpack.c.l.b16 %v82
    %v169 = vunpack.c.h.b16 %v82
    %v170 = vunpack.c.l.b16 %v83
    %v171 = vunpack.c.h.b16 %v83
    %v172 = vunpack.c.l.b16 %v84
    %v173 = vunpack.c.h.b16 %v84
    %v174 = vunpack.c.l.b16 %v85
    %v175 = vunpack.c.h.b16 %v85
    %v176 = vunpack.c.l.b16 %v86
    %v177 = vunpack.c.h.b16 %v86
    %v178 = vunpack.c.l.b16 %v87
    %v179 = vunpack.c.h.b16 %v87
    %v180 = vunpack.c.l.b16 %v88
    %v181 = vunpack.c.h.b16 %v88
    %v182 = vunpack.c.l.b16 %v89
    %v183 = vunpack.c.h.b16 %v89
    %v184 = vunpack.c.l.b16 %v90
    %v185 = vunpack.c.h.b16 %v90
    %v186 = vunpack.c.l.b16 %v91
    %v187 = vunpack.c.h.b16 %v91
    %v188 = vpack.c.b16 %v128, %v124
    %v189 = vpack.c.b16 %v129, %v125
    %v190 = vpack.c.b16 %v130, %v126
    %v191 = vpack.c.b16 %v131, %v127
    %v192 = vpack.c.b16 %v136, %v132
    %v193 = vpack.c.b16 %v137, %v133
    %v194 = vpack.c.b16 %v138, %v134
    %v195 = vpack.c.b16 %v139, %v135
    %v196 = vpack.c.b16 %v144, %v140
    %v197 = vpack.c.b16 %v145, %v141
    %v198 = vpack.c.b16 %v146, %v142
    %v199 = vpack.c.b16 %v147, %v143
    %v200 = vpack.c.b16 %v152, %v148
    %v201 = vpack.c.b16 %v153, %v149
    %v202 = vpack.c.b16 %v154, %v150
    %v203 = vpack.c.b16 %v155, %v151
    %v204 = vpack.c.b16 %v160, %v156
    %v205 = vpack.c.b16 %v161, %v157
    %v206 = vpack.c.b16 %v162, %v158
    %v207 = vpack.c.b16 %v163, %v159
    %v208 = vpack.c.b16 %v168, %v164
    %v209 = vpack.c.b16 %v169, %v165
    %v210 = vpack.c.b16 %v170, %v166
    %v211 = vpack.c.b16 %v171, %v167
    %v212 = vpack.c.b16 %v176, %v172
    %v213 = vpack.c.b16 %v177, %v173
    %v214 = vpack.c.b16 %v178, %v174
    %v215 = vpack.c.b16 %v179, %v175
    %v216 = vpack.c.b16 %v184, %v180
    %v217 = vpack.c.b16 %v185, %v181
    %v218 = vpack.c.b16 %v186, %v182
    %v219 = vpack.c.b16 %v187, %v183
    %252 = vmatprep.subr.bf16.mxu0 %v189
    %253 = vmatpush1.bf16.msra.mxu0 %v188
    %254 = vmatprep.subr.bf16.mxu0 %v193
    %255 = vmatpush1.bf16.msra.mxu0 %v192
    %256 = vmatprep.subr.bf16.mxu0 %v197
    %257 = vmatpush1.bf16.msra.mxu0 %v196
    %258 = vmatprep.subr.bf16.mxu0 %v201
    %259 = vmatpush1.bf16.msra.mxu0 %v200
    %260 = vmatprep.subr.bf16.mxu0 %v205
    %261 = vmatpush1.bf16.msra.mxu0 %v204
    %262 = vmatprep.subr.bf16.mxu0 %v209
    %263 = vmatpush1.bf16.msra.mxu0 %v208
    %264 = vmatprep.subr.bf16.mxu0 %v213
    %265 = vmatpush1.bf16.msra.mxu0 %v212
    %266 = vmatprep.subr.bf16.mxu0 %v217
    %267 = vmatpush1.bf16.msra.mxu0 %v216
    %268 = vmatprep.subr.bf16.mxu0 0
    %269 = vmatpush1.bf16.msra.mxu0 0
    %270 = vmatprep.subr.bf16.mxu0 0
    %271 = vmatpush1.bf16.msra.mxu0 0
    %272 = vmatprep.subr.bf16.mxu0 0
    %273 = vmatpush1.bf16.msra.mxu0 0
    %274 = vmatprep.subr.bf16.mxu0 0
    %275 = vmatpush1.bf16.msra.mxu0 0
    %276 = vmatprep.subr.bf16.mxu0 0
    %277 = vmatpush1.bf16.msra.mxu0 0
    %278 = vmatprep.subr.bf16.mxu0 0
    %279 = vmatpush1.bf16.msra.mxu0 0
    %280 = vmatprep.subr.bf16.mxu0 0
    %281 = vmatpush1.bf16.msra.mxu0 0
    %282 = vmatprep.subr.bf16.mxu0 0
    %283 = vmatpush1.bf16.msra.mxu0 0
    %284 = vmatprep.mubr.bf16.mxu0 0
    %285 = vmatmul.mubr.bf16.gmra.mrb[0].mxu0 %v59
    %v286 = vpop.f32.mrb[0].mxu0
    %v287 = vadd.f32 0.0, %v286
    %v288 = vpop.f32.mrb[0].mxu0
    %v289 = vadd.f32 0.0, %v288
    %v290 = vpop.f32.mrb[0].mxu0
    %v291 = vadd.f32 0.0, %v290
    %v292 = vpop.f32.mrb[0].mxu0
    %v293 = vadd.f32 0.0, %v292
    %294 = vdwg.mxu0
    %295 = vmatprep.subr.bf16.mxu0 %v191
    %296 = vmatpush1.bf16.msra.mxu0 %v190
    %297 = vmatprep.subr.bf16.mxu0 %v195
    %298 = vmatpush1.bf16.msra.mxu0 %v194
    %299 = vmatprep.subr.bf16.mxu0 %v199
    %300 = vmatpush1.bf16.msra.mxu0 %v198
    %301 = vmatprep.subr.bf16.mxu0 %v203
    %302 = vmatpush1.bf16.msra.mxu0 %v202
    %303 = vmatprep.subr.bf16.mxu0 %v207
    %304 = vmatpush1.bf16.msra.mxu0 %v206
    %305 = vmatprep.subr.bf16.mxu0 %v211
    %306 = vmatpush1.bf16.msra.mxu0 %v210
    %307 = vmatprep.subr.bf16.mxu0 %v215
    %308 = vmatpush1.bf16.msra.mxu0 %v214
    %309 = vmatprep.subr.bf16.mxu0 %v219
    %310 = vmatpush1.bf16.msra.mxu0 %v218
    %311 = vmatprep.subr.bf16.mxu0 0
    %312 = vmatpush1.bf16.msra.mxu0 0
    %313 = vmatprep.subr.bf16.mxu0 0
    %314 = vmatpush1.bf16.msra.mxu0 0
    %315 = vmatprep.subr.bf16.mxu0 0
    %316 = vmatpush1.bf16.msra.mxu0 0
    %317 = vmatprep.subr.bf16.mxu0 0
    %318 = vmatpush1.bf16.msra.mxu0 0
    %319 = vmatprep.subr.bf16.mxu0 0
    %320 = vmatpush1.bf16.msra.mxu0 0
    %321 = vmatprep.subr.bf16.mxu0 0
    %322 = vmatpush1.bf16.msra.mxu0 0
    %323 = vmatprep.subr.bf16.mxu0 0
    %324 = vmatpush1.bf16.msra.mxu0 0
    %325 = vmatprep.subr.bf16.mxu0 0
    %326 = vmatpush1.bf16.msra.mxu0 0
    %327 = vmatprep.mubr.bf16.mxu0 0
    %328 = vmatmul.mubr.bf16.gmra.mrb[0].mxu0 %v59
    %v329 = vpop.f32.mrb[0].mxu0
    %v330 = vadd.f32 0.0, %v329
    %v331 = vpop.f32.mrb[0].mxu0
    %v332 = vadd.f32 0.0, %v331
    %v333 = vpop.f32.mrb[0].mxu0
    %v334 = vadd.f32 0.0, %v333
    %v335 = vpop.f32.mrb[0].mxu0
    %v336 = vadd.f32 0.0, %v335
    %337 = vdwg.mxu0
    %v338 = vsub.f32 0.0, %v287
    %v339 = vsub.f32 0.0, %v289
    %v340 = vsub.f32 0.0, %v291
    %v341 = vsub.f32 0.0, %v293
    %v342 = vmul.f32 %v338, 1.442695
    %v343 = vpow.pop %v342
    %v344 = vmul.f32 %v339, 1.442695
    %v345 = vpow.pop %v344
    %v346 = vmul.f32 %v340, 1.442695
    %v347 = vpow.pop %v346
    %v348 = vmul.f32 %v341, 1.442695
    %v349 = vpow.pop %v348
    %v350 = vadd.f32 %v343, 1.0
    %v351 = vadd.f32 %v345, 1.0
    %v352 = vadd.f32 %v347, 1.0
    %v353 = vadd.f32 %v349, 1.0
    %v354 = vrcp.pop %v350
    %v355 = vrcp.pop %v351
    %v356 = vrcp.pop %v352
    %v357 = vrcp.pop %v353
    %v358 = vmul.f32 %v287, %v354
    %v359 = vmul.f32 %v289, %v355
    %v360 = vmul.f32 %v291, %v356
    %v361 = vmul.f32 %v293, %v357
    %v362 = vmul.f32 %v358, %v330
    %v363 = vmul.f32 %v359, %v332
    %v364 = vmul.f32 %v360, %v334
    %v365 = vmul.f32 %v361, %v336
    %v366 = vpack.c.bf16 %v364, %v362
    %v367 = vpack.c.bf16 %v365, %v363
    %v368 = vld [vmem:[#allocation7] sm:$0xf]
    %v369 = vld [vmem:[#allocation7 + $0x4] sm:$0xf]
    %v370 = vld [vmem:[#allocation7 + $0x8] sm:$0xf]
    %v371 = vld [vmem:[#allocation7 + $0xc] sm:$0xf]
    %v372 = vld [vmem:[#allocation7 + $0x10] sm:$0xf]
    %v373 = vld [vmem:[#allocation7 + $0x14] sm:$0xf]
    %v374 = vld [vmem:[#allocation7 + $0x18] sm:$0xf]
    %v375 = vld [vmem:[#allocation7 + $0x1c] sm:$0xf]
    %v376 = vld [vmem:[#allocation7 + $0x20] sm:$0xf]
    %v377 = vld [vmem:[#allocation7 + $0x24] sm:$0xf]
    %v378 = vld [vmem:[#allocation7 + $0x28] sm:$0xf]
    %v379 = vld [vmem:[#allocation7 + $0x2c] sm:$0xf]
    %v380 = vld [vmem:[#allocation7 + $0x30] sm:$0xf]
    %v381 = vld [vmem:[#allocation7 + $0x34] sm:$0xf]
    %v382 = vld [vmem:[#allocation7 + $0x38] sm:$0xf]
    %v383 = vld [vmem:[#allocation7 + $0x3c] sm:$0xf]
    %v384 = vld [vmem:[#allocation7 + $0x40] sm:$0xf]
    %v385 = vld [vmem:[#allocation7 + $0x44] sm:$0xf]
    %v386 = vld [vmem:[#allocation7 + $0x48] sm:$0xf]
    %v387 = vld [vmem:[#allocation7 + $0x4c] sm:$0xf]
    %v388 = vld [vmem:[#allocation7 + $0x50] sm:$0xf]
    %v389 = vld [vmem:[#allocation7 + $0x54] sm:$0xf]
    %v390 = vld [vmem:[#allocation7 + $0x58] sm:$0xf]
    %v391 = vld [vmem:[#allocation7 + $0x5c] sm:$0xf]
    %v392 = vld [vmem:[#allocation7 + $0x60] sm:$0xf]
    %v393 = vld [vmem:[#allocation7 + $0x64] sm:$0xf]
    %v394 = vld [vmem:[#allocation7 + $0x68] sm:$0xf]
    %v395 = vld [vmem:[#allocation7 + $0x6c] sm:$0xf]
    %v396 = vld [vmem:[#allocation7 + $0x70] sm:$0xf]
    %v397 = vld [vmem:[#allocation7 + $0x74] sm:$0xf]
    %v398 = vld [vmem:[#allocation7 + $0x78] sm:$0xf]
    %v399 = vld [vmem:[#allocation7 + $0x7c] sm:$0xf]
    %v432 = vunpack.c.l.b16 %v368
    %v433 = vunpack.c.l.b16 %v369
    %v434 = vunpack.c.l.b16 %v370
    %v435 = vunpack.c.l.b16 %v371
    %v436 = vunpack.c.l.b16 %v372
    %v437 = vunpack.c.l.b16 %v373
    %v438 = vunpack.c.l.b16 %v374
    %v439 = vunpack.c.l.b16 %v375
    %v440 = vunpack.c.l.b16 %v376
    %v441 = vunpack.c.l.b16 %v377
    %v442 = vunpack.c.l.b16 %v378
    %v443 = vunpack.c.l.b16 %v379
    %v444 = vunpack.c.l.b16 %v380
    %v445 = vunpack.c.l.b16 %v381
    %v446 = vunpack.c.l.b16 %v382
    %v447 = vunpack.c.l.b16 %v383
    %v448 = vunpack.c.l.b16 %v384
    %v449 = vunpack.c.l.b16 %v385
    %v450 = vunpack.c.l.b16 %v386
    %v451 = vunpack.c.l.b16 %v387
    %v452 = vunpack.c.l.b16 %v388
    %v453 = vunpack.c.l.b16 %v389
    %v454 = vunpack.c.l.b16 %v390
    %v455 = vunpack.c.l.b16 %v391
    %v456 = vunpack.c.l.b16 %v392
    %v457 = vunpack.c.l.b16 %v393
    %v458 = vunpack.c.l.b16 %v394
    %v459 = vunpack.c.l.b16 %v395
    %v460 = vunpack.c.l.b16 %v396
    %v461 = vunpack.c.l.b16 %v397
    %v462 = vunpack.c.l.b16 %v398
    %v463 = vunpack.c.l.b16 %v399
    %v464 = vpack.c.b16 %v433, %v432
    %v465 = vpack.c.b16 %v435, %v434
    %v466 = vpack.c.b16 %v437, %v436
    %v467 = vpack.c.b16 %v439, %v438
    %v468 = vpack.c.b16 %v441, %v440
    %v469 = vpack.c.b16 %v443, %v442
    %v470 = vpack.c.b16 %v445, %v444
    %v471 = vpack.c.b16 %v447, %v446
    %v472 = vpack.c.b16 %v449, %v448
    %v473 = vpack.c.b16 %v451, %v450
    %v474 = vpack.c.b16 %v453, %v452
    %v475 = vpack.c.b16 %v455, %v454
    %v476 = vpack.c.b16 %v457, %v456
    %v477 = vpack.c.b16 %v459, %v458
    %v478 = vpack.c.b16 %v461, %v460
    %v479 = vpack.c.b16 %v463, %v462
    %496 = vmatprep.subr.bf16.mxu0 0
    %497 = vmatpush1.bf16.msra.mxu0 %v464
    %498 = vmatprep.subr.bf16.mxu0 0
    %499 = vmatpush1.bf16.msra.mxu0 %v465
    %500 = vmatprep.subr.bf16.mxu0 0
    %501 = vmatpush1.bf16.msra.mxu0 %v466
    %502 = vmatprep.subr.bf16.mxu0 0
    %503 = vmatpush1.bf16.msra.mxu0 %v467
    %504 = vmatprep.subr.bf16.mxu0 0
    %505 = vmatpush1.bf16.msra.mxu0 %v468
    %506 = vmatprep.subr.bf16.mxu0 0
    %507 = vmatpush1.bf16.msra.mxu0 %v469
    %508 = vmatprep.subr.bf16.mxu0 0
    %509 = vmatpush1.bf16.msra.mxu0 %v470
    %510 = vmatprep.subr.bf16.mxu0 0
    %511 = vmatpush1.bf16.msra.mxu0 %v471
    %512 = vmatprep.subr.bf16.mxu0 0
    %513 = vmatpush1.bf16.msra.mxu0 %v472
    %514 = vmatprep.subr.bf16.mxu0 0
    %515 = vmatpush1.bf16.msra.mxu0 %v473
    %516 = vmatprep.subr.bf16.mxu0 0
    %517 = vmatpush1.bf16.msra.mxu0 %v474
    %518 = vmatprep.subr.bf16.mxu0 0
    %519 = vmatpush1.bf16.msra.mxu0 %v475
    %520 = vmatprep.subr.bf16.mxu0 0
    %521 = vmatpush1.bf16.msra.mxu0 %v476
    %522 = vmatprep.subr.bf16.mxu0 0
    %523 = vmatpush1.bf16.msra.mxu0 %v477
    %524 = vmatprep.subr.bf16.mxu0 0
    %525 = vmatpush1.bf16.msra.mxu0 %v478
    %526 = vmatprep.subr.bf16.mxu0 0
    %527 = vmatpush1.bf16.msra.mxu0 %v479
    %528 = vmatprep.mubr.bf16.mxu0 %v367
    %529 = vmatmul.mubr.bf16.gmra.mrb[0].mxu0 %v366
    %v530 = vpop.f32.mrb[0].mxu0
    %v531 = vadd.f32 0.0, %v530
    %v532 = vpop.f32.mrb[0].mxu0
    %v533 = vpop.f32.mrb[0].mxu0
    %v534 = vadd.f32 0.0, %v533
    %v535 = vpop.f32.mrb[0].mxu0
    %536 = vdwg.mxu0
    %p537 = scmp.eq.s32.totalorder 0, 0
    // Predicated region
    $region26: #{tpu_custom_call.1} parent=1 // pred_check
      %p538 = pneg %p537
    $region27: #{tpu_custom_call.1} parent=1 // pred_check_branch
      %540 = sbr.rel (%p538) target = $region29
    $region28: #{tpu_custom_call.1} parent=1 // pred_region
      %541 = vst [vmem:[#allocation8] sm:$0xff] %v531
      %542 = vst [vmem:[#allocation8 + $0x8] sm:$0xff] %v534
    $region29: #{tpu_custom_call.1} parent=1 // pred_fallthru
      _
    %p543 = scmp.gt.s32.totalorder 0, 0
    // Predicated region
    $region30: #{tpu_custom_call.1} parent=1 // pred_check
      %p544 = pneg %p543
    $region31: #{tpu_custom_call.1} parent=1 // pred_check_branch
      %546 = sbr.rel (%p544) target = $region33
    $region32: #{tpu_custom_call.1} parent=1 // pred_region
      %v547 = vld [vmem:[#allocation8] sm:$0xff]
      %v548 = vld [vmem:[#allocation8 + $0x8] sm:$0xff]
      %v549 = vadd.f32 %v547, %v531
      %v550 = vadd.f32 %v548, %v534
      %551 = vst [vmem:[#allocation8] sm:$0xff] %v549
      %552 = vst [vmem:[#allocation8 + $0x8] sm:$0xff] %v550
    $region33: #{tpu_custom_call.1} parent=1 // pred_fallthru
      _
    // Predicated region
    $region34: #{tpu_custom_call.1} parent=1 // pred_check
      _
    $region35: #{tpu_custom_call.1} parent=1 // pred_check_branch
      %554 = sbr.rel (0) target = $region37
    $region36: #{tpu_custom_call.1} parent=1 // pred_region
      %s556 = ssub.s32 256, 256
      %557 = vsyncadd [#allocation4], %s556
      %s558 = sshll.u32 [#allocation8], 4
      %s559 = int_to_ptr.vmem [resolvable:$true] %s558
      %564 = dma.vmem_to_hbm [thread:$0]  %s559, 256, %s3, [#allocation4], 128, 128, 8
    $region37: #{tpu_custom_call.1} parent=1 // pred_fallthru
      _
    // Predicated region
    $region38: #{tpu_custom_call.1} parent=1 // pred_check
      _
    $region39: #{tpu_custom_call.1} parent=1 // pred_check_branch
      %566 = sbr.rel (0) target = $region41
    $region40: #{tpu_custom_call.1} parent=1 // pred_region
      %567 = dma.done [#allocation4], 256
    $region41: #{tpu_custom_call.1} parent=1 // pred_fallthru
      _
    %568 = vsyncpa [#allocation3], 1
    %569 = vsyncpa [#allocation6], 1
    %570 = vsyncpa [#allocation4], 1

</llo_original>
